<compile_context>
chip_gen: v7x
topology: tpu7x:2x2x1
jax: 0.10.0
libtpu: 0.0.40
codegen_flags: <defaults>
</compile_context>

<pallas_src>
import functools

import numpy as np

import jax
import jax.numpy as jnp
from jax.experimental import pallas as pl
from jax.experimental.pallas import tpu as pltpu


def _round_up(x: int, m: int) -> int:
    return (x + m - 1) // m * m


def _padded_tile_bytes(shape, dtype) -> int:
    """VMEM bytes of a tile after (sublane, lane) layout padding."""
    itemsize = jnp.dtype(dtype).itemsize
    dims = list(shape)
    dims[-1] = _round_up(dims[-1], 128)                     # lane axis -> 128
    if len(dims) >= 2:
        dims[-2] = _round_up(dims[-2], max(8, 32 // itemsize))  # sublane axis
    n = 1
    for d in dims:
        n *= int(d)
    return n * itemsize


def _conv2d_cd_kernel(x_ref, w_ref, m_ref, o_ref, *, img_w):
    # x_ref: (1, Cin, P)       flattened-pixel input slab, one batch element
    # w_ref: (9, tCout, Cin)   folded weights, tap t = kh*3 + kw
    # m_ref: (9, P)            0/1 boundary masks per tap (padding=1 semantics)
    # o_ref: (1, tCout, P)     lane-dense output block
    t_cout = o_ref.shape[1]
    P = o_ref.shape[2]
    slab = x_ref[0]                                          # (Cin, P)

    acc = jnp.zeros((t_cout, P), jnp.float32)
    for kh in range(3):
        for kw in range(3):
            t = kh * 3 + kw
            if kh == 1 and kw == 1:
                v = slab                  # centre tap: no shift, mask all-ones
            else:
                # out[:, p] needs slab[:, p + s]; lanes where p + s falls
                # outside the image (or wraps a row) are zeroed by the mask,
                # which is exactly conv2d's padding=1 behaviour.
                s = ((kh - 1) * img_w + (kw - 1)) % P
                if s == 0:
                    v = slab
                else:
                    v = jnp.concatenate([slab[:, s:], slab[:, :s]], axis=-1)
                v = v * m_ref[t:t + 1, :]
            # Single f32 accumulation chain -> MRB accumulate on v7x.
            acc = acc + jnp.dot(w_ref[t], v, preferred_element_type=jnp.float32)

    o_ref[...] = acc[None].astype(o_ref.dtype)


def conv2d_cd(x_nchw: jax.Array, weight_oihw: jax.Array, theta: float = 0.7,
              *, compute_dtype=jnp.bfloat16) -> jax.Array:
    """Central-difference conv. x: (N, Cin, H, W); weight: (Cout, Cin, 3, 3).

    Returns (N, Cout, H, W) in x.dtype, matching the PyTorch module with its
    default stride=1, padding=1, dilation=1, groups=1, bias=False config.
    compute_dtype=None keeps x.dtype for the matmul inputs; accumulation is
    always f32 on the MXU.
    """
    N, Cin, H, W = x_nchw.shape
    Cout, Cin_w, KH, KW = weight_oihw.shape
    assert Cin == Cin_w and KH == 3 and KW == 3, "only the 3x3 stride-1 pad-1 config"

    out_dtype = x_nchw.dtype
    if compute_dtype is None:
        compute_dtype = out_dtype
    P = H * W

    # --- weights: fold theta into the centre tap in f32, then cast ---
    #   conv(x, W) - theta*conv1x1(x, sum W)  ==  conv(x, W')
    #   with W'[:, :, 1, 1] = W[:, :, 1, 1] - theta * sum_{kh,kw} W.
    # (theta == 0 reduces to the plain conv / PyTorch early-return branch.)
    w32 = weight_oihw.astype(jnp.float32)
    w32 = w32.at[:, :, 1, 1].add(-float(theta) * w32.sum(axis=(2, 3)))
    w_taps = jnp.transpose(w32, (2, 3, 0, 1)).reshape(KH * KW, Cout, Cin)
    w_taps = w_taps.astype(compute_dtype)

    # --- input: free reshape, no transpose / pad HBM passes ---
    x_flat = x_nchw.reshape(N, Cin, P)
    if x_flat.dtype != compute_dtype:
        x_flat = x_flat.astype(compute_dtype)   # no-op when dtypes already match

    # --- per-tap boundary masks (compile-time constants), padding=1 semantics ---
    hh, ww = np.meshgrid(np.arange(H), np.arange(W), indexing="ij")
    masks = []
    for kh in range(KH):
        for kw in range(KW):
            valid = ((hh + kh - 1 >= 0) & (hh + kh - 1 < H) &
                     (ww + kw - 1 >= 0) & (ww + kw - 1 < W))
            masks.append(valid.reshape(-1))
    tap_mask = jnp.asarray(np.stack(masks), dtype=compute_dtype)        # (9, P)

    # --- Cout tiling: bounds the f32 accumulator and gives megacore a second
    #     parallel axis when N == 1; whole Cout for small channel counts. ---
    t_co = 128 if (Cout > 128 and Cout % 128 == 0) else Cout
    grid = (N, Cout // t_co)

    # --- (8,128)-padding-aware VMEM budget, generation-aware cap ---
    in_b = _padded_tile_bytes((1, Cin, P), compute_dtype)
    w_b = _padded_tile_bytes((KH * KW, t_co, Cin), compute_dtype)
    m_b = _padded_tile_bytes((KH * KW, P), compute_dtype)
    out_b = _padded_tile_bytes((1, t_co, P), out_dtype)
    acc_b = _padded_tile_bytes((t_co, P), jnp.float32)
    tmp_b = 2 * in_b                        # shifted + masked slab temporaries
    est = 2 * (in_b + w_b + m_b + out_b) + acc_b + tmp_b + (4 << 20)
    try:
        vmem_cap = int(pltpu.get_tpu_info().vmem_capacity_bytes)
    except Exception:
        vmem_cap = 64 << 20                 # v7x per-core size: safe everywhere
    vmem_limit = int(min(max(est, 32 << 20), vmem_cap * 7 // 8))

    out_flat = pl.pallas_call(
        functools.partial(_conv2d_cd_kernel, img_w=W),
        out_shape=jax.ShapeDtypeStruct((N, Cout, P), out_dtype),
        grid_spec=pltpu.PrefetchScalarGridSpec(
            num_scalar_prefetch=0,
            grid=grid,
            in_specs=[
                # x slab: constant over the inner Cout axis -> revisited, no re-DMA.
                pl.BlockSpec((1, Cin, P), lambda n, co: (n, 0, 0)),
                pl.BlockSpec((KH * KW, t_co, Cin), lambda n, co: (0, co, 0)),
                pl.BlockSpec((KH * KW, P), lambda n, co: (0, 0)),
            ],
            out_specs=pl.BlockSpec((1, t_co, P), lambda n, co: (n, co, 0)),
        ),
        compiler_params=pltpu.CompilerParams(
            dimension_semantics=("parallel", "parallel"),
            vmem_limit_bytes=vmem_limit,
        ),
    )(x_flat, w_taps, tap_mask)

    return out_flat.reshape(N, Cout, H, W)          # free reshape back to NCHW


def _reference_conv2d_cd(x_nchw, weight_oihw, theta):
    """Pure-JAX reference mirroring the PyTorch forward."""
    dn = jax.lax.conv_dimension_numbers(x_nchw.shape, weight_oihw.shape,
                                        ("NCHW", "OIHW", "NCHW"))
    out_normal = jax.lax.conv_general_dilated(
        x_nchw, weight_oihw, window_strides=(1, 1), padding=((1, 1), (1, 1)),
        dimension_numbers=dn)
    kernel_diff = weight_oihw.sum(axis=(2, 3))[:, :, None, None]
    out_diff = jax.lax.conv_general_dilated(
        x_nchw, kernel_diff, window_strides=(1, 1), padding=((0, 0), (0, 0)),
        dimension_numbers=dn)
    return out_normal - theta * out_diff


if __name__ == "__main__":
    key = jax.random.PRNGKey(0)
    kx, kw_key = jax.random.split(key)

    N, Cin, H, W = 2, 4, 16, 16
    Cout, K = 8, 3
    theta = 0.7

    x = jax.random.normal(kx, (N, Cin, H, W), dtype=jnp.float32)
    # Deterministic Conv2d-style weight init (kaiming-uniform-ish bound).
    fan_in = Cin * K * K
    bound = 1.0 / (fan_in ** 0.5)
    weight = jax.random.uniform(kw_key, (Cout, Cin, K, K), dtype=jnp.float32,
                                minval=-bound, maxval=bound)

    ref = _reference_conv2d_cd(x, weight, theta)

    # f32 compute path: tight tolerance.
    out_f32 = jax.block_until_ready(
        conv2d_cd(x, weight, theta=theta, compute_dtype=jnp.float32))
    assert out_f32.shape == (N, Cout, H, W), out_f32.shape
    assert jnp.allclose(out_f32, ref, atol=1e-4, rtol=1e-4), \
        float(jnp.max(jnp.abs(out_f32 - ref)))

    # Default bf16 compute path (f32 MXU accumulation): looser tolerance.
    out_bf16 = jax.block_until_ready(conv2d_cd(x, weight, theta=theta))
    assert out_bf16.shape == (N, Cout, H, W), out_bf16.shape
    assert jnp.allclose(out_bf16, ref, atol=5e-2, rtol=5e-2), \
        float(jnp.max(jnp.abs(out_bf16 - ref)))

    # theta == 0 reduces to a plain conv (PyTorch early-return branch).
    ref0 = _reference_conv2d_cd(x, weight, 0.0)
    out0 = jax.block_until_ready(
        conv2d_cd(x, weight, theta=0.0, compute_dtype=jnp.float32))
    assert jnp.allclose(out0, ref0, atol=1e-4, rtol=1e-4), \
        float(jnp.max(jnp.abs(out0 - ref0)))

    print("KERNEL_OK")
</pallas_src>

<mosaic_0001>
module attributes {stable_mosaic.version = 11 : i64} {
  func.func @_conv2d_cd_kernel(%arg0: i32, %arg1: i32, %arg2: memref<1x4x256xf32, #tpu.memory_space<vmem>>, %arg3: memref<9x8x4xf32, #tpu.memory_space<vmem>>, %arg4: memref<9x256xf32, #tpu.memory_space<vmem>>, %arg5: memref<1x8x256xf32, #tpu.memory_space<vmem>>) attributes {dimension_semantics = [#tpu.dimension_semantics<parallel>, #tpu.dimension_semantics<parallel>], iteration_bounds = array<i64: 2, 1>, scalar_prefetch = 0 : i64, scratch_operands = 0 : i64, tpu.core_type = #tpu.core_type<tc>, window_params = [{transform_indices = @transform_0, window_bounds = array<i64: 1, 4, 256>}, {transform_indices = @transform_1, window_bounds = array<i64: 9, 8, 4>}, {pipeline_mode = #tpu.pipeline_mode<synchronous>, transform_indices = @transform_2, window_bounds = array<i64: 9, 256>}, {transform_indices = @transform_3, window_bounds = array<i64: 1, 8, 256>}]} {
    %c0 = arith.constant 0 : index
    %c0_0 = arith.constant 0 : index
    %c0_1 = arith.constant 0 : index
    %0 = vector.load %arg2[%c0, %c0_0, %c0_1] : memref<1x4x256xf32, #tpu.memory_space<vmem>>, vector<1x4x256xf32>
    %1 = vector.shape_cast %0 : vector<1x4x256xf32> to vector<4x256xf32>
    %cst = arith.constant 0.000000e+00 : f32
    %2 = vector.broadcast %cst : f32 to vector<8x256xf32>
    %3 = vector.extract_strided_slice %1 {offsets = [0, 239], sizes = [4, 17], strides = [1, 1]} : vector<4x256xf32> to vector<4x17xf32>
    %4 = vector.extract_strided_slice %1 {offsets = [0, 0], sizes = [4, 239], strides = [1, 1]} : vector<4x256xf32> to vector<4x239xf32>
    %5 = tpu.concatenate %3, %4 in 1 : vector<4x17xf32>, vector<4x239xf32> -> vector<4x256xf32>
    %c0_2 = arith.constant 0 : index
    %c0_3 = arith.constant 0 : index
    %6 = vector.load %arg4[%c0_2, %c0_3] : memref<9x256xf32, #tpu.memory_space<vmem>>, vector<1x256xf32>
    %7 = vector.broadcast %6 : vector<1x256xf32> to vector<4x256xf32>
    %8 = arith.mulf %5, %7 : vector<4x256xf32>
    %c0_4 = arith.constant 0 : index
    %c0_5 = arith.constant 0 : index
    %c0_6 = arith.constant 0 : index
    %9 = vector.load %arg3[%c0_4, %c0_5, %c0_6] : memref<9x8x4xf32, #tpu.memory_space<vmem>>, vector<1x8x4xf32>
    %10 = vector.shape_cast %9 : vector<1x8x4xf32> to vector<8x4xf32>
    %cst_7 = arith.constant dense<0.000000e+00> : vector<8x256xf32>
    %11 = tpu.matmul %10, %8, %cst_7 {dimension_numbers = #tpu.dot_dimension_numbers<[1], [0], [0], [1], [0, 0, 1, 1], [], []>} : vector<8x4xf32>, vector<4x256xf32>, vector<8x256xf32> -> vector<8x256xf32>
    %12 = arith.addf %2, %11 : vector<8x256xf32>
    %13 = vector.extract_strided_slice %1 {offsets = [0, 240], sizes = [4, 16], strides = [1, 1]} : vector<4x256xf32> to vector<4x16xf32>
    %14 = vector.extract_strided_slice %1 {offsets = [0, 0], sizes = [4, 240], strides = [1, 1]} : vector<4x256xf32> to vector<4x240xf32>
    %15 = tpu.concatenate %13, %14 in 1 : vector<4x16xf32>, vector<4x240xf32> -> vector<4x256xf32>
    %c1 = arith.constant 1 : index
    %c0_8 = arith.constant 0 : index
    %16 = vector.load %arg4[%c1, %c0_8] : memref<9x256xf32, #tpu.memory_space<vmem>>, vector<1x256xf32>
    %17 = vector.broadcast %16 : vector<1x256xf32> to vector<4x256xf32>
    %18 = arith.mulf %15, %17 : vector<4x256xf32>
    %c1_9 = arith.constant 1 : index
    %c0_10 = arith.constant 0 : index
    %c0_11 = arith.constant 0 : index
    %19 = vector.load %arg3[%c1_9, %c0_10, %c0_11] : memref<9x8x4xf32, #tpu.memory_space<vmem>>, vector<1x8x4xf32>
    %20 = vector.shape_cast %19 : vector<1x8x4xf32> to vector<8x4xf32>
    %cst_12 = arith.constant dense<0.000000e+00> : vector<8x256xf32>
    %21 = tpu.matmul %20, %18, %cst_12 {dimension_numbers = #tpu.dot_dimension_numbers<[1], [0], [0], [1], [0, 0, 1, 1], [], []>} : vector<8x4xf32>, vector<4x256xf32>, vector<8x256xf32> -> vector<8x256xf32>
    %22 = arith.addf %12, %21 : vector<8x256xf32>
    %23 = vector.extract_strided_slice %1 {offsets = [0, 241], sizes = [4, 15], strides = [1, 1]} : vector<4x256xf32> to vector<4x15xf32>
    %24 = vector.extract_strided_slice %1 {offsets = [0, 0], sizes = [4, 241], strides = [1, 1]} : vector<4x256xf32> to vector<4x241xf32>
    %25 = tpu.concatenate %23, %24 in 1 : vector<4x15xf32>, vector<4x241xf32> -> vector<4x256xf32>
    %c2 = arith.constant 2 : index
    %c0_13 = arith.constant 0 : index
    %26 = vector.load %arg4[%c2, %c0_13] : memref<9x256xf32, #tpu.memory_space<vmem>>, vector<1x256xf32>
    %27 = vector.broadcast %26 : vector<1x256xf32> to vector<4x256xf32>
    %28 = arith.mulf %25, %27 : vector<4x256xf32>
    %c2_14 = arith.constant 2 : index
    %c0_15 = arith.constant 0 : index
    %c0_16 = arith.constant 0 : index
    %29 = vector.load %arg3[%c2_14, %c0_15, %c0_16] : memref<9x8x4xf32, #tpu.memory_space<vmem>>, vector<1x8x4xf32>
    %30 = vector.shape_cast %29 : vector<1x8x4xf32> to vector<8x4xf32>
    %cst_17 = arith.constant dense<0.000000e+00> : vector<8x256xf32>
    %31 = tpu.matmul %30, %28, %cst_17 {dimension_numbers = #tpu.dot_dimension_numbers<[1], [0], [0], [1], [0, 0, 1, 1], [], []>} : vector<8x4xf32>, vector<4x256xf32>, vector<8x256xf32> -> vector<8x256xf32>
    %32 = arith.addf %22, %31 : vector<8x256xf32>
    %33 = vector.extract_strided_slice %1 {offsets = [0, 255], sizes = [4, 1], strides = [1, 1]} : vector<4x256xf32> to vector<4x1xf32>
    %34 = vector.extract_strided_slice %1 {offsets = [0, 0], sizes = [4, 255], strides = [1, 1]} : vector<4x256xf32> to vector<4x255xf32>
    %35 = tpu.concatenate %33, %34 in 1 : vector<4x1xf32>, vector<4x255xf32> -> vector<4x256xf32>
    %c3 = arith.constant 3 : index
    %c0_18 = arith.constant 0 : index
    %36 = vector.load %arg4[%c3, %c0_18] : memref<9x256xf32, #tpu.memory_space<vmem>>, vector<1x256xf32>
    %37 = vector.broadcast %36 : vector<1x256xf32> to vector<4x256xf32>
    %38 = arith.mulf %35, %37 : vector<4x256xf32>
    %c3_19 = arith.constant 3 : index
    %c0_20 = arith.constant 0 : index
    %c0_21 = arith.constant 0 : index
    %39 = vector.load %arg3[%c3_19, %c0_20, %c0_21] : memref<9x8x4xf32, #tpu.memory_space<vmem>>, vector<1x8x4xf32>
    %40 = vector.shape_cast %39 : vector<1x8x4xf32> to vector<8x4xf32>
    %cst_22 = arith.constant dense<0.000000e+00> : vector<8x256xf32>
    %41 = tpu.matmul %40, %38, %cst_22 {dimension_numbers = #tpu.dot_dimension_numbers<[1], [0], [0], [1], [0, 0, 1, 1], [], []>} : vector<8x4xf32>, vector<4x256xf32>, vector<8x256xf32> -> vector<8x256xf32>
    %42 = arith.addf %32, %41 : vector<8x256xf32>
    %c4 = arith.constant 4 : index
    %c0_23 = arith.constant 0 : index
    %c0_24 = arith.constant 0 : index
    %43 = vector.load %arg3[%c4, %c0_23, %c0_24] : memref<9x8x4xf32, #tpu.memory_space<vmem>>, vector<1x8x4xf32>
    %44 = vector.shape_cast %43 : vector<1x8x4xf32> to vector<8x4xf32>
    %cst_25 = arith.constant dense<0.000000e+00> : vector<8x256xf32>
    %45 = tpu.matmul %44, %1, %cst_25 {dimension_numbers = #tpu.dot_dimension_numbers<[1], [0], [0], [1], [0, 0, 1, 1], [], []>} : vector<8x4xf32>, vector<4x256xf32>, vector<8x256xf32> -> vector<8x256xf32>
    %46 = arith.addf %42, %45 : vector<8x256xf32>
    %47 = vector.extract_strided_slice %1 {offsets = [0, 1], sizes = [4, 255], strides = [1, 1]} : vector<4x256xf32> to vector<4x255xf32>
    %48 = vector.extract_strided_slice %1 {offsets = [0, 0], sizes = [4, 1], strides = [1, 1]} : vector<4x256xf32> to vector<4x1xf32>
    %49 = tpu.concatenate %47, %48 in 1 : vector<4x255xf32>, vector<4x1xf32> -> vector<4x256xf32>
    %c5 = arith.constant 5 : index
    %c0_26 = arith.constant 0 : index
    %50 = vector.load %arg4[%c5, %c0_26] : memref<9x256xf32, #tpu.memory_space<vmem>>, vector<1x256xf32>
    %51 = vector.broadcast %50 : vector<1x256xf32> to vector<4x256xf32>
    %52 = arith.mulf %49, %51 : vector<4x256xf32>
    %c5_27 = arith.constant 5 : index
    %c0_28 = arith.constant 0 : index
    %c0_29 = arith.constant 0 : index
    %53 = vector.load %arg3[%c5_27, %c0_28, %c0_29] : memref<9x8x4xf32, #tpu.memory_space<vmem>>, vector<1x8x4xf32>
    %54 = vector.shape_cast %53 : vector<1x8x4xf32> to vector<8x4xf32>
    %cst_30 = arith.constant dense<0.000000e+00> : vector<8x256xf32>
    %55 = tpu.matmul %54, %52, %cst_30 {dimension_numbers = #tpu.dot_dimension_numbers<[1], [0], [0], [1], [0, 0, 1, 1], [], []>} : vector<8x4xf32>, vector<4x256xf32>, vector<8x256xf32> -> vector<8x256xf32>
    %56 = arith.addf %46, %55 : vector<8x256xf32>
    %57 = vector.extract_strided_slice %1 {offsets = [0, 15], sizes = [4, 241], strides = [1, 1]} : vector<4x256xf32> to vector<4x241xf32>
    %58 = vector.extract_strided_slice %1 {offsets = [0, 0], sizes = [4, 15], strides = [1, 1]} : vector<4x256xf32> to vector<4x15xf32>
    %59 = tpu.concatenate %57, %58 in 1 : vector<4x241xf32>, vector<4x15xf32> -> vector<4x256xf32>
    %c6 = arith.constant 6 : index
    %c0_31 = arith.constant 0 : index
    %60 = vector.load %arg4[%c6, %c0_31] : memref<9x256xf32, #tpu.memory_space<vmem>>, vector<1x256xf32>
    %61 = vector.broadcast %60 : vector<1x256xf32> to vector<4x256xf32>
    %62 = arith.mulf %59, %61 : vector<4x256xf32>
    %c6_32 = arith.constant 6 : index
    %c0_33 = arith.constant 0 : index
    %c0_34 = arith.constant 0 : index
    %63 = vector.load %arg3[%c6_32, %c0_33, %c0_34] : memref<9x8x4xf32, #tpu.memory_space<vmem>>, vector<1x8x4xf32>
    %64 = vector.shape_cast %63 : vector<1x8x4xf32> to vector<8x4xf32>
    %cst_35 = arith.constant dense<0.000000e+00> : vector<8x256xf32>
    %65 = tpu.matmul %64, %62, %cst_35 {dimension_numbers = #tpu.dot_dimension_numbers<[1], [0], [0], [1], [0, 0, 1, 1], [], []>} : vector<8x4xf32>, vector<4x256xf32>, vector<8x256xf32> -> vector<8x256xf32>
    %66 = arith.addf %56, %65 : vector<8x256xf32>
    %67 = vector.extract_strided_slice %1 {offsets = [0, 16], sizes = [4, 240], strides = [1, 1]} : vector<4x256xf32> to vector<4x240xf32>
    %68 = vector.extract_strided_slice %1 {offsets = [0, 0], sizes = [4, 16], strides = [1, 1]} : vector<4x256xf32> to vector<4x16xf32>
    %69 = tpu.concatenate %67, %68 in 1 : vector<4x240xf32>, vector<4x16xf32> -> vector<4x256xf32>
    %c7 = arith.constant 7 : index
    %c0_36 = arith.constant 0 : index
    %70 = vector.load %arg4[%c7, %c0_36] : memref<9x256xf32, #tpu.memory_space<vmem>>, vector<1x256xf32>
    %71 = vector.broadcast %70 : vector<1x256xf32> to vector<4x256xf32>
    %72 = arith.mulf %69, %71 : vector<4x256xf32>
    %c7_37 = arith.constant 7 : index
    %c0_38 = arith.constant 0 : index
    %c0_39 = arith.constant 0 : index
    %73 = vector.load %arg3[%c7_37, %c0_38, %c0_39] : memref<9x8x4xf32, #tpu.memory_space<vmem>>, vector<1x8x4xf32>
    %74 = vector.shape_cast %73 : vector<1x8x4xf32> to vector<8x4xf32>
    %cst_40 = arith.constant dense<0.000000e+00> : vector<8x256xf32>
    %75 = tpu.matmul %74, %72, %cst_40 {dimension_numbers = #tpu.dot_dimension_numbers<[1], [0], [0], [1], [0, 0, 1, 1], [], []>} : vector<8x4xf32>, vector<4x256xf32>, vector<8x256xf32> -> vector<8x256xf32>
    %76 = arith.addf %66, %75 : vector<8x256xf32>
    %77 = vector.extract_strided_slice %1 {offsets = [0, 17], sizes = [4, 239], strides = [1, 1]} : vector<4x256xf32> to vector<4x239xf32>
    %78 = vector.extract_strided_slice %1 {offsets = [0, 0], sizes = [4, 17], strides = [1, 1]} : vector<4x256xf32> to vector<4x17xf32>
    %79 = tpu.concatenate %77, %78 in 1 : vector<4x239xf32>, vector<4x17xf32> -> vector<4x256xf32>
    %c8 = arith.constant 8 : index
    %c0_41 = arith.constant 0 : index
    %80 = vector.load %arg4[%c8, %c0_41] : memref<9x256xf32, #tpu.memory_space<vmem>>, vector<1x256xf32>
    %81 = vector.broadcast %80 : vector<1x256xf32> to vector<4x256xf32>
    %82 = arith.mulf %79, %81 : vector<4x256xf32>
    %c8_42 = arith.constant 8 : index
    %c0_43 = arith.constant 0 : index
    %c0_44 = arith.constant 0 : index
    %83 = vector.load %arg3[%c8_42, %c0_43, %c0_44] : memref<9x8x4xf32, #tpu.memory_space<vmem>>, vector<1x8x4xf32>
    %84 = vector.shape_cast %83 : vector<1x8x4xf32> to vector<8x4xf32>
    %cst_45 = arith.constant dense<0.000000e+00> : vector<8x256xf32>
    %85 = tpu.matmul %84, %82, %cst_45 {dimension_numbers = #tpu.dot_dimension_numbers<[1], [0], [0], [1], [0, 0, 1, 1], [], []>} : vector<8x4xf32>, vector<4x256xf32>, vector<8x256xf32> -> vector<8x256xf32>
    %86 = arith.addf %76, %85 : vector<8x256xf32>
    %87 = vector.shape_cast %86 : vector<8x256xf32> to vector<1x8x256xf32>
    %c0_46 = arith.constant 0 : index
    %c0_47 = arith.constant 0 : index
    %c0_48 = arith.constant 0 : index
    %88 = vector.load %arg5[%c0_46, %c0_47, %c0_48] : memref<1x8x256xf32, #tpu.memory_space<vmem>>, vector<1x8x256xf32>
    tpu.vector_store %arg5[%c0_46, %c0_47, %c0_48], %87 {strides = array<i32>} : memref<1x8x256xf32, #tpu.memory_space<vmem>>, vector<1x8x256xf32>,
    return
  }
  func.func @transform_0(%arg0: i32, %arg1: i32) -> (i32, i32, i32) {
    %c0_i32 = arith.constant 0 : i32
    %c0_i32_0 = arith.constant 0 : i32
    %c0_i32_1 = arith.constant 0 : i32
    return %arg0, %c0_i32, %c0_i32_0 : i32, i32, i32
  }
  func.func @transform_1(%arg0: i32, %arg1: i32) -> (i32, i32, i32) {
    %c0_i32 = arith.constant 0 : i32
    %c0_i32_0 = arith.constant 0 : i32
    %c0_i32_1 = arith.constant 0 : i32
    return %c0_i32, %arg1, %c0_i32_0 : i32, i32, i32
  }
  func.func @transform_2(%arg0: i32, %arg1: i32) -> (i32, i32) {
    %c0_i32 = arith.constant 0 : i32
    %c0_i32_0 = arith.constant 0 : i32
    %c0_i32_1 = arith.constant 0 : i32
    return %c0_i32, %c0_i32_0 : i32, i32
  }
  func.func @transform_3(%arg0: i32, %arg1: i32) -> (i32, i32, i32) {
    %c0_i32 = arith.constant 0 : i32
    %c0_i32_0 = arith.constant 0 : i32
    return %arg0, %arg1, %c0_i32 : i32, i32, i32
  }
}

</mosaic_0001>

<llo_original>
// kernel: tpu_custom_call.1
$region0: #{tpu_custom_call.1}
  #allocation0 [shape = 'u32[]', space=smem, size = 0x4, offset = 0x4, fixed_abs, tag = 'smem constant byte address 0x4 - core index']
  #allocation1 [shape = 'u32[144,128]{1,0:T(1,128)}', space=vmem, size = 0x12000, scoped, tag = 'internal scratch']
  %s0 = inlined_call_operand.vmem [shape: f32[2,4,256], index: 0, kind: input, shape index: {}]
  %s1 = inlined_call_operand.vmem [shape: f32[9,8,4], index: 1, kind: input, shape index: {}]
  %s2 = inlined_call_operand.vmem [shape: f32[9,256], index: 2, kind: input, shape index: {}]
  %s3 = inlined_call_operand.hbm [shape: f32[2,8,256], index: 3, kind: output, shape index: {}]
  %s4 = sld [smem:[#allocation0]]
  $region45: #{tpu_custom_call.1} parent=0
    _
  %s6 = ssub.s32 1, %s4
  %s7 = scalar_select 0, %s6, %s4
  $region1: #{tpu_custom_call.1} parent=0
    #allocation2 [shape = 'u8[16384]{0}', space=vmem, size = 0x4000, scoped, tag = 'output window, operand 0']
    #allocation3 [shape = 's32[2]{0}', space=sflag, size = 0x8, scoped, tag = 'scoped memory for tpu_custom_call.1']
    %8 = vsyncpa [#allocation3], 0
    %s9 = scalar_lea.sflag [#allocation3], 1
    %10 = vsyncpa %s9, 0
    loop: start=0, step=1, limit=4
    $region2: #{tpu_custom_call.1} parent=1 // loop_pre_header
      _
    $region3: #{tpu_custom_call.1} parent=1 // loop_header
      %s12 = sphi 0, %s16
      %p13 = scmp.ge.s32.totalorder %s12, 4
      %s19 = sphi 0, %s31
      %s20 = sphi 0, %s27
      %s21 = sphi 0, %s19
      %s22 = sphi 0, %s20
      %s23 = sphi 0, %s21
      %s24 = sphi 0, %s22
      %s34 = sphi 0, %s36
      %s37 = sphi 0, %s34
      %s38 = sphi 0, %s37
      %s54 = sphi 0, %s38
      %s60 = sphi 0, %s62
      %s63 = sphi 0, %s60
      %s64 = sphi 0, %s63
      %s80 = sphi 0, %s64
      %s84 = sphi 0, %s84
      %s86 = sphi 0, %s84
      %s87 = sphi 0, %s86
      %s101 = sphi 0, %s87
      %s109 = sphi 0, %s111
      %s112 = sphi 0, %s109
      %s113 = sphi 0, %s112
      %s129 = sphi 0, %s113
    $region4: #{tpu_custom_call.1} parent=1 // loop_header_branch
      %15 = sbr.rel (%p13) target = $region8
    $region5: #{tpu_custom_call.1} parent=1 // loop_body
      %s17 = ssub.s32 %s12, 1
      %s18 = ssub.s32 %s12, 2
      %s25 = sadd.s32 1, %s20
      %p26 = scmp.ge.s32.totalorder %s25, 1
      %s27 = scalar_select %p26, 0, %s25
      %s28 = sadd.s32 1, %s19
      %s29 = scalar_select %p26, %s28, %s19
      %p30 = scmp.ge.s32.totalorder %s29, 2
      %s31 = scalar_select %p30, 0, %s29
      %s32 = ssub.s32 %s19, %s31
      %p33 = scmp.eq.s32.totalorder %s32, 0
      %s35 = sadd.s32 %s34, 1
      %s36 = scalar_select %p33, %s34, %s35
      %p39 = pneg %p33
      %p40 = scmp.eq.s32.totalorder %s12, 1
      %p41 = por %p39, %p40
      %p42 = scmp.ne.s32.totalorder %s34, %s37
      %p43 = scmp.eq.s32.totalorder %s12, 0
      %p44 = por %p42, %p43
      %p45 = scmp.ne.s32.totalorder %s34, %s37
      %p46 = scmp.eq.s32.totalorder %s17, 1
      %p47 = por %p45, %p46
      %p48 = scmp.ne.s32.totalorder %s37, %s38
      %p49 = scmp.eq.s32.totalorder %s17, 0
      %p50 = por %p48, %p49
      %p51 = scmp.ne.s32.totalorder %s37, %s38
      %p52 = scmp.eq.s32.totalorder %s18, 1
      %p53 = por %p51, %p52
      %p55 = scmp.ne.s32.totalorder %s38, %s54
      %p56 = scmp.eq.s32.totalorder %s18, 0
      %p57 = por %p55, %p56
      %s58 = ssub.s32 %s20, %s27
      %p59 = scmp.eq.s32.totalorder %s58, 0
      %s61 = sadd.s32 %s60, 1
      %s62 = scalar_select %p59, %s60, %s61
      %p65 = pneg %p59
      %p66 = scmp.eq.s32.totalorder %s12, 1
      %p67 = por %p65, %p66
      %p68 = scmp.ne.s32.totalorder %s60, %s63
      %p69 = scmp.eq.s32.totalorder %s12, 0
      %p70 = por %p68, %p69
      %p71 = scmp.ne.s32.totalorder %s60, %s63
      %p72 = scmp.eq.s32.totalorder %s17, 1
      %p73 = por %p71, %p72
      %p74 = scmp.ne.s32.totalorder %s63, %s64
      %p75 = scmp.eq.s32.totalorder %s17, 0
      %p76 = por %p74, %p75
      %p77 = scmp.ne.s32.totalorder %s63, %s64
      %p78 = scmp.eq.s32.totalorder %s18, 1
      %p79 = por %p77, %p78
      %p81 = scmp.ne.s32.totalorder %s64, %s80
      %p82 = scmp.eq.s32.totalorder %s18, 0
      %p83 = por %p81, %p82
      %s85 = sadd.s32 %s84, 1
      %p88 = scmp.eq.s32.totalorder %s12, 1
      %p89 = scmp.ne.s32.totalorder %s84, %s86
      %p90 = scmp.eq.s32.totalorder %s12, 0
      %p91 = por %p89, %p90
      %p92 = scmp.ne.s32.totalorder %s84, %s86
      %p93 = scmp.eq.s32.totalorder %s17, 1
      %p94 = por %p92, %p93
      %p95 = scmp.ne.s32.totalorder %s86, %s87
      %p96 = scmp.eq.s32.totalorder %s17, 0
      %p97 = por %p95, %p96
      %p98 = scmp.ne.s32.totalorder %s86, %s87
      %p99 = scmp.eq.s32.totalorder %s18, 1
      %p100 = por %p98, %p99
      %p102 = scmp.ne.s32.totalorder %s87, %s101
      %p103 = scmp.eq.s32.totalorder %s18, 0
      %p104 = por %p102, %p103
      %s105 = ssub.s32 %s19, %s31
      %s106 = ssub.s32 %s20, %s27
      %s107 = sor.u32 %s105, %s106
      %p108 = scmp.eq.s32.totalorder %s107, 0
      %s110 = sadd.s32 %s109, 1
      %s111 = scalar_select %p108, %s109, %s110
      %p114 = pneg %p108
      %p115 = scmp.eq.s32.totalorder %s12, 1
      %p116 = por %p114, %p115
      %p117 = scmp.ne.s32.totalorder %s109, %s112
      %p118 = scmp.eq.s32.totalorder %s12, 0
      %p119 = por %p117, %p118
      %p120 = scmp.ne.s32.totalorder %s109, %s112
      %p121 = scmp.eq.s32.totalorder %s17, 1
      %p122 = por %p120, %p121
      %p123 = scmp.ne.s32.totalorder %s112, %s113
      %p124 = scmp.eq.s32.totalorder %s17, 0
      %p125 = por %p123, %p124
      %p126 = scmp.ne.s32.totalorder %s112, %s113
      %p127 = scmp.eq.s32.totalorder %s18, 1
      %p128 = por %p126, %p127
      %p130 = scmp.ne.s32.totalorder %s113, %s129
      %p131 = scmp.eq.s32.totalorder %s18, 0
      %p132 = por %p130, %p131
      %p133 = scmp.le.s32.totalorder 1, %s12
      %p134 = scmp.lt.s32.totalorder %s12, 3
      %p135 = pnand %p133, %p134
      %p136 = pneg %p135
      // Predicated region
      $region9: #{tpu_custom_call.1} parent=5 // pred_check
        _
      $region10: #{tpu_custom_call.1} parent=5 // pred_check_branch
        %138 = sbr.rel (%p135) target = $region12
      $region11: #{tpu_custom_call.1} parent=5 // pred_region
        %s139 = ssub.s32 %s12, 1
        // Predicated region
        $region13: #{tpu_custom_call.1} parent=11 // pred_check
          %p140 = pneg %p76
        $region14: #{tpu_custom_call.1} parent=11 // pred_check_branch
          %142 = sbr.rel (%p140) target = $region16
        $region15: #{tpu_custom_call.1} parent=11 // pred_region
          %p143 = scmp.lt.s32.totalorder %s22, 0
          %s144 = scalar_select %p143, %s22, 0
          %s145 = smul.addr %s144, 8
          %s146 = scalar_lea.vmem %s1, %s145
        $region16: #{tpu_custom_call.1} parent=11 // pred_fallthru
          _
        // Predicated region
        $region17: #{tpu_custom_call.1} parent=11 // pred_check
          %p147 = pneg %p97
        $region18: #{tpu_custom_call.1} parent=11 // pred_check_branch
          %149 = sbr.rel (%p147) target = $region20
        $region19: #{tpu_custom_call.1} parent=11 // pred_region
          _
        $region20: #{tpu_custom_call.1} parent=11 // pred_fallthru
          _
      $region12: #{tpu_custom_call.1} parent=5 // pred_fallthru
        _
      %p150 = scmp.lt.s32.totalorder %s12, 2
      // Predicated region
      $region21: #{tpu_custom_call.1} parent=5 // pred_check
        %p151 = pneg %p150
      $region22: #{tpu_custom_call.1} parent=5 // pred_check_branch
        %153 = sbr.rel (%p151) target = $region24
      $region23: #{tpu_custom_call.1} parent=5 // pred_region
        // Predicated region
        $region25: #{tpu_custom_call.1} parent=23 // pred_check
          %p154 = pneg %p44
        $region26: #{tpu_custom_call.1} parent=23 // pred_check_branch
          %156 = sbr.rel (%p154) target = $region28
        $region27: #{tpu_custom_call.1} parent=23 // pred_region
          %p157 = scmp.lt.s32.totalorder %s19, 1
          %s158 = scalar_select %p157, %s19, 1
          %s159 = smul.addr %s158, 2
          %s160 = smul.addr %s159, 4
          %s161 = scalar_lea.vmem %s0, %s160
        $region28: #{tpu_custom_call.1} parent=23 // pred_fallthru
          _
      $region24: #{tpu_custom_call.1} parent=5 // pred_fallthru
        _
      %p162 = scmp.le.s32.totalorder 1, %s12
      %p163 = scmp.lt.s32.totalorder %s12, 3
      %p164 = pnand %p162, %p163
      %p165 = pneg %p164
      // Predicated region
      $region29: #{tpu_custom_call.1} parent=5 // pred_check
        _
      $region30: #{tpu_custom_call.1} parent=5 // pred_check_branch
        %167 = sbr.rel (%p164) target = $region32
      $region31: #{tpu_custom_call.1} parent=5 // pred_region
        %s168 = ssub.s32 %s12, 1
        %p169 = scmp.lt.s32.totalorder %s21, 1
        %s170 = scalar_select %p169, %s21, 1
        %s171 = smul.addr %s170, 2
        %s172 = smul.addr %s171, 4
        %s173 = scalar_lea.vmem %s0, %s172
        %p174 = pneg %p50
        %p175 = pneg %p47
        %p176 = scmp.lt.s32.totalorder %s22, 0
        %s177 = scalar_select %p176, %s22, 0
        %s178 = smul.addr %s177, 8
        %s179 = scalar_lea.vmem %s1, %s178
        %p180 = pneg %p76
        %p181 = pneg %p73
        %p182 = pneg %p97
        %p183 = pneg %p94
        %p184 = pneg %p125
        %p185 = pneg %p122
        %s186 = sand.u32 %s112, 1
        %s187 = scalar_lea.sflag [#allocation3], %s186
        %s188 = sand.u32 %s112, 1
        %s189 = smul.addr %s188, 16
        %s190 = scalar_lea.vmem [#allocation2], %s189
        %p191 = scmp.lt.s32.totalorder %s21, 1
        %s192 = scalar_select %p191, %s21, 1
        %s193 = smul.addr %s192, 2
        %s194 = smul.addr %s193, 4
        %s195 = scalar_lea.vmem %s0, %s194
        %p196 = scmp.lt.s32.totalorder %s22, 0
        %s197 = scalar_select %p196, %s22, 0
        %s198 = smul.addr %s197, 8
        %s199 = scalar_lea.vmem %s1, %s198
        %v200 = vld [vmem:[%s195] sm:$0xff]
        %v202 = vcombine.high %v200, %v200
        %203 = vrot.lane.b32.xlu0 %v202, 17
        %v204 = vpop.permute.xlu0 %203
        %206 = vrot.lane.b32.xlu0 %v200, 17
        %v207 = vpop.permute.xlu0 %206
        %vm208 = vcmask 138240
        %v209 = vsel %vm208, %v207, %v204
        %v212 = vsel %vm208, %v204, %v207
        %v213 = vld [vmem:[%s2] ss:$8 sm:$0x3]
        %v215 = vlaneseq
        %v216 = vshrl.u32 %v215, 7
        %v217 = vsub.s32 0, %v216
        %v218 = vrot.slane %v213, %v217
        %v219 = vlaneseq
        %v220 = vshrl.u32 %v219, 7
        %v221 = vsub.s32 1, %v220
        %v222 = vrot.slane %v213, %v221
        %v225 = vmul.f32 %v212, %v218
        %v226 = vmul.f32 %v209, %v222
        %v227 = vld [vmem:[%s199] sm:$0xff]
        %228 = vrot.lane.b32.xlu0 %v202, 16
        %v229 = vpop.permute.xlu0 %228
        %231 = vrot.lane.b32.xlu0 %v200, 16
        %v232 = vpop.permute.xlu0 %231
        %vm233 = vcmask 130048
        %v234 = vsel %vm233, %v232, %v229
        %v237 = vsel %vm233, %v229, %v232
        %s238 = scalar_lea.vmem %s2, 1
        %v239 = vld [vmem:[%s238] ss:$8 sm:$0x3]
        %v241 = vlaneseq
        %v242 = vshrl.u32 %v241, 7
        %v243 = vsub.s32 0, %v242
        %v244 = vrot.slane %v239, %v243
        %v245 = vlaneseq
        %v246 = vshrl.u32 %v245, 7
        %v247 = vsub.s32 1, %v246
        %v248 = vrot.slane %v239, %v247
        %v251 = vmul.f32 %v237, %v244
        %v252 = vmul.f32 %v234, %v248
        %s253 = scalar_lea.vmem %s199, 8
        %v254 = vld [vmem:[%s253] sm:$0xff]
        %vm255 = vcmask 31744
        %v257 = vsel %vm255, %v254, 0
        %vm259 = vcmask 1043456
        %v261 = vsel %vm259, %v251, 0
        %v264 = vsel %vm259, %v252, 0
        %266 = vmatprep.subr.mxu0 %v264
        %267 = vmatpush1.msra.mxu0 %v261
        %268 = vmatprep.subr.mxu0 0.0
        %269 = vmatpush1.msra.mxu0 0.0
        %270 = vmatprep.subr.mxu0 0.0
        %271 = vmatpush1.msra.mxu0 0.0
        %272 = vmatprep.subr.mxu0 0.0
        %273 = vmatpush1.msra.mxu0 0.0
        %274 = vmatprep.subr.mxu0 0.0
        %275 = vmatpush1.msra.mxu0 0.0
        %276 = vmatprep.subr.mxu0 0.0
        %277 = vmatpush1.msra.mxu0 0.0
        %278 = vmatprep.subr.mxu0 0.0
        %279 = vmatpush1.msra.mxu0 0.0
        %280 = vmatprep.subr.mxu0 0.0
        %281 = vmatpush1.msra.mxu0 0.0
        %282 = vmatprep.subr.mxu0 0.0
        %283 = vmatpush1.msra.mxu0 0.0
        %284 = vmatprep.subr.mxu0 0.0
        %285 = vmatpush1.msra.mxu0 0.0
        %286 = vmatprep.subr.mxu0 0.0
        %287 = vmatpush1.msra.mxu0 0.0
        %288 = vmatprep.subr.mxu0 0.0
        %289 = vmatpush1.msra.mxu0 0.0
        %290 = vmatprep.subr.mxu0 0.0
        %291 = vmatpush1.msra.mxu0 0.0
        %292 = vmatprep.subr.mxu0 0.0
        %293 = vmatpush1.msra.mxu0 0.0
        %294 = vmatprep.subr.mxu0 0.0
        %295 = vmatpush1.msra.mxu0 0.0
        %296 = vmatprep.subr.mxu0 0.0
        %297 = vmatpush1.msra.mxu0 0.0
        %298 = vmatprep.subr.mxu0 0.0
        %299 = vmatpush1.msra.mxu0 0.0
        %300 = vmatprep.subr.mxu0 0.0
        %301 = vmatpush1.msra.mxu0 0.0
        %302 = vmatprep.subr.mxu0 0.0
        %303 = vmatpush1.msra.mxu0 0.0
        %304 = vmatprep.subr.mxu0 0.0
        %305 = vmatpush1.msra.mxu0 0.0
        %306 = vmatprep.subr.mxu0 0.0
        %307 = vmatpush1.msra.mxu0 0.0
        %308 = vmatprep.subr.mxu0 0.0
        %309 = vmatpush1.msra.mxu0 0.0
        %310 = vmatprep.subr.mxu0 0.0
        %311 = vmatpush1.msra.mxu0 0.0
        %312 = vmatprep.subr.mxu0 0.0
        %313 = vmatpush1.msra.mxu0 0.0
        %314 = vmatprep.subr.mxu0 0.0
        %315 = vmatpush1.msra.mxu0 0.0
        %316 = vmatprep.subr.mxu0 0.0
        %317 = vmatpush1.msra.mxu0 0.0
        %318 = vmatprep.subr.mxu0 0.0
        %319 = vmatpush1.msra.mxu0 0.0
        %320 = vmatprep.subr.mxu0 0.0
        %321 = vmatpush1.msra.mxu0 0.0
        %322 = vmatprep.subr.mxu0 0.0
        %323 = vmatpush1.msra.mxu0 0.0
        %324 = vmatprep.subr.mxu0 0.0
        %325 = vmatpush1.msra.mxu0 0.0
        %326 = vmatprep.subr.mxu0 0.0
        %327 = vmatpush1.msra.mxu0 0.0
        %328 = vmatprep.subr.mxu0 0.0
        %329 = vmatpush1.msra.mxu0 0.0
        %330 = vmatprep.mubr.f32.mxu0 0.0
        %331 = vmatmul.mubr.f32.gmra.mrb[0].mxu0 %v257
        %v332 = vpop.f32.mrb[0].mxu0
        %v333 = vadd.f32 0.0, %v332
        %v334 = vpop.f32.mrb[0].mxu0
        %v335 = vadd.f32 0.0, %v334
        %336 = vdwg.mxu0
        %v338 = vsel %vm255, %v227, 0
        %v341 = vsel %vm259, %v225, 0
        %v344 = vsel %vm259, %v226, 0
        %346 = vmatprep.subr.mxu0 %v344
        %347 = vmatpush1.msra.mxu0 %v341
        %348 = vmatprep.subr.mxu0 0.0
        %349 = vmatpush1.msra.mxu0 0.0
        %350 = vmatprep.subr.mxu0 0.0
        %351 = vmatpush1.msra.mxu0 0.0
        %352 = vmatprep.subr.mxu0 0.0
        %353 = vmatpush1.msra.mxu0 0.0
        %354 = vmatprep.subr.mxu0 0.0
        %355 = vmatpush1.msra.mxu0 0.0
        %356 = vmatprep.subr.mxu0 0.0
        %357 = vmatpush1.msra.mxu0 0.0
        %358 = vmatprep.subr.mxu0 0.0
        %359 = vmatpush1.msra.mxu0 0.0
        %360 = vmatprep.subr.mxu0 0.0
        %361 = vmatpush1.msra.mxu0 0.0
        %362 = vmatprep.subr.mxu0 0.0
        %363 = vmatpush1.msra.mxu0 0.0
        %364 = vmatprep.subr.mxu0 0.0
        %365 = vmatpush1.msra.mxu0 0.0
        %366 = vmatprep.subr.mxu0 0.0
        %367 = vmatpush1.msra.mxu0 0.0
        %368 = vmatprep.subr.mxu0 0.0
        %369 = vmatpush1.msra.mxu0 0.0
        %370 = vmatprep.subr.mxu0 0.0
        %371 = vmatpush1.msra.mxu0 0.0
        %372 = vmatprep.subr.mxu0 0.0
        %373 = vmatpush1.msra.mxu0 0.0
        %374 = vmatprep.subr.mxu0 0.0
        %375 = vmatpush1.msra.mxu0 0.0
        %376 = vmatprep.subr.mxu0 0.0
        %377 = vmatpush1.msra.mxu0 0.0
        %378 = vmatprep.subr.mxu0 0.0
        %379 = vmatpush1.msra.mxu0 0.0
        %380 = vmatprep.subr.mxu0 0.0
        %381 = vmatpush1.msra.mxu0 0.0
        %382 = vmatprep.subr.mxu0 0.0
        %383 = vmatpush1.msra.mxu0 0.0
        %384 = vmatprep.subr.mxu0 0.0
        %385 = vmatpush1.msra.mxu0 0.0
        %386 = vmatprep.subr.mxu0 0.0
        %387 = vmatpush1.msra.mxu0 0.0
        %388 = vmatprep.subr.mxu0 0.0
        %389 = vmatpush1.msra.mxu0 0.0
        %390 = vmatprep.subr.mxu0 0.0
        %391 = vmatpush1.msra.mxu0 0.0
        %392 = vmatprep.subr.mxu0 0.0
        %393 = vmatpush1.msra.mxu0 0.0
        %394 = vmatprep.subr.mxu0 0.0
        %395 = vmatpush1.msra.mxu0 0.0
        %396 = vmatprep.subr.mxu0 0.0
        %397 = vmatpush1.msra.mxu0 0.0
        %398 = vmatprep.subr.mxu0 0.0
        %399 = vmatpush1.msra.mxu0 0.0
        %400 = vmatprep.subr.mxu0 0.0
        %401 = vmatpush1.msra.mxu0 0.0
        %402 = vmatprep.subr.mxu0 0.0
        %403 = vmatpush1.msra.mxu0 0.0
        %404 = vmatprep.subr.mxu0 0.0
        %405 = vmatpush1.msra.mxu0 0.0
        %406 = vmatprep.subr.mxu0 0.0
        %407 = vmatpush1.msra.mxu0 0.0
        %408 = vmatprep.subr.mxu0 0.0
        %409 = vmatpush1.msra.mxu0 0.0
        %410 = vmatprep.mubr.f32.mxu0 0.0
        %411 = vmatmul.mubr.f32.gmra.mrb[0].mxu0 %v338
        %v412 = vpop.f32.mrb[0].mxu0
        %v413 = vadd.f32 %v333, %v412
        %v414 = vpop.f32.mrb[0].mxu0
        %v415 = vadd.f32 %v335, %v414
        %416 = vdwg.mxu0
        %417 = vrot.lane.b32.xlu0 %v202, 15
        %v418 = vpop.permute.xlu0 %417
        %420 = vrot.lane.b32.xlu0 %v200, 15
        %v421 = vpop.permute.xlu0 %420
        %vm422 = vcmask 121856
        %v423 = vsel %vm422, %v421, %v418
        %v426 = vsel %vm422, %v418, %v421
        %s427 = scalar_lea.vmem %s2, 2
        %v428 = vld [vmem:[%s427] ss:$8 sm:$0x3]
        %v430 = vlaneseq
        %v431 = vshrl.u32 %v430, 7
        %v432 = vsub.s32 0, %v431
        %v433 = vrot.slane %v428, %v432
        %v434 = vlaneseq
        %v435 = vshrl.u32 %v434, 7
        %v436 = vsub.s32 1, %v435
        %v437 = vrot.slane %v428, %v436
        %v440 = vmul.f32 %v426, %v433
        %v441 = vmul.f32 %v423, %v437
        %s442 = scalar_lea.vmem %s199, 16
        %v443 = vld [vmem:[%s442] sm:$0xff]
        %v445 = vsel %vm255, %v443, 0
        %v448 = vsel %vm259, %v440, 0
        %v451 = vsel %vm259, %v441, 0
        %453 = vmatprep.subr.mxu0 %v451
        %454 = vmatpush1.msra.mxu0 %v448
        %455 = vmatprep.subr.mxu0 0.0
        %456 = vmatpush1.msra.mxu0 0.0
        %457 = vmatprep.subr.mxu0 0.0
        %458 = vmatpush1.msra.mxu0 0.0
        %459 = vmatprep.subr.mxu0 0.0
        %460 = vmatpush1.msra.mxu0 0.0
        %461 = vmatprep.subr.mxu0 0.0
        %462 = vmatpush1.msra.mxu0 0.0
        %463 = vmatprep.subr.mxu0 0.0
        %464 = vmatpush1.msra.mxu0 0.0
        %465 = vmatprep.subr.mxu0 0.0
        %466 = vmatpush1.msra.mxu0 0.0
        %467 = vmatprep.subr.mxu0 0.0
        %468 = vmatpush1.msra.mxu0 0.0
        %469 = vmatprep.subr.mxu0 0.0
        %470 = vmatpush1.msra.mxu0 0.0
        %471 = vmatprep.subr.mxu0 0.0
        %472 = vmatpush1.msra.mxu0 0.0
        %473 = vmatprep.subr.mxu0 0.0
        %474 = vmatpush1.msra.mxu0 0.0
        %475 = vmatprep.subr.mxu0 0.0
        %476 = vmatpush1.msra.mxu0 0.0
        %477 = vmatprep.subr.mxu0 0.0
        %478 = vmatpush1.msra.mxu0 0.0
        %479 = vmatprep.subr.mxu0 0.0
        %480 = vmatpush1.msra.mxu0 0.0
        %481 = vmatprep.subr.mxu0 0.0
        %482 = vmatpush1.msra.mxu0 0.0
        %483 = vmatprep.subr.mxu0 0.0
        %484 = vmatpush1.msra.mxu0 0.0
        %485 = vmatprep.subr.mxu0 0.0
        %486 = vmatpush1.msra.mxu0 0.0
        %487 = vmatprep.subr.mxu0 0.0
        %488 = vmatpush1.msra.mxu0 0.0
        %489 = vmatprep.subr.mxu0 0.0
        %490 = vmatpush1.msra.mxu0 0.0
        %491 = vmatprep.subr.mxu0 0.0
        %492 = vmatpush1.msra.mxu0 0.0
        %493 = vmatprep.subr.mxu0 0.0
        %494 = vmatpush1.msra.mxu0 0.0
        %495 = vmatprep.subr.mxu0 0.0
        %496 = vmatpush1.msra.mxu0 0.0
        %497 = vmatprep.subr.mxu0 0.0
        %498 = vmatpush1.msra.mxu0 0.0
        %499 = vmatprep.subr.mxu0 0.0
        %500 = vmatpush1.msra.mxu0 0.0
        %501 = vmatprep.subr.mxu0 0.0
        %502 = vmatpush1.msra.mxu0 0.0
        %503 = vmatprep.subr.mxu0 0.0
        %504 = vmatpush1.msra.mxu0 0.0
        %505 = vmatprep.subr.mxu0 0.0
        %506 = vmatpush1.msra.mxu0 0.0
        %507 = vmatprep.subr.mxu0 0.0
        %508 = vmatpush1.msra.mxu0 0.0
        %509 = vmatprep.subr.mxu0 0.0
        %510 = vmatpush1.msra.mxu0 0.0
        %511 = vmatprep.subr.mxu0 0.0
        %512 = vmatpush1.msra.mxu0 0.0
        %513 = vmatprep.subr.mxu0 0.0
        %514 = vmatpush1.msra.mxu0 0.0
        %515 = vmatprep.subr.mxu0 0.0
        %516 = vmatpush1.msra.mxu0 0.0
        %517 = vmatprep.mubr.f32.mxu0 0.0
        %518 = vmatmul.mubr.f32.gmra.mrb[0].mxu0 %v445
        %v519 = vpop.f32.mrb[0].mxu0
        %v520 = vadd.f32 0.0, %v519
        %v521 = vpop.f32.mrb[0].mxu0
        %v522 = vadd.f32 0.0, %v521
        %523 = vdwg.mxu0
        %v524 = vadd.f32 %v413, %v520
        %v525 = vadd.f32 %v415, %v522
        %526 = vrot.lane.b32.xlu0 %v202, 1
        %v527 = vpop.permute.xlu0 %526
        %529 = vrot.lane.b32.xlu0 %v200, 1
        %v530 = vpop.permute.xlu0 %529
        %vm531 = vcmask 7168
        %v532 = vsel %vm531, %v530, %v527
        %v535 = vsel %vm531, %v527, %v530
        %s536 = scalar_lea.vmem %s2, 3
        %v537 = vld [vmem:[%s536] ss:$8 sm:$0x3]
        %v539 = vlaneseq
        %v540 = vshrl.u32 %v539, 7
        %v541 = vsub.s32 0, %v540
        %v542 = vrot.slane %v537, %v541
        %v543 = vlaneseq
        %v544 = vshrl.u32 %v543, 7
        %v545 = vsub.s32 1, %v544
        %v546 = vrot.slane %v537, %v545
        %v549 = vmul.f32 %v535, %v542
        %v550 = vmul.f32 %v532, %v546
        %s551 = scalar_lea.vmem %s199, 24
        %v552 = vld [vmem:[%s551] sm:$0xff]
        %v554 = vsel %vm255, %v552, 0
        %v557 = vsel %vm259, %v549, 0
        %v560 = vsel %vm259, %v550, 0
        %562 = vmatprep.subr.mxu0 %v560
        %563 = vmatpush1.msra.mxu0 %v557
        %564 = vmatprep.subr.mxu0 0.0
        %565 = vmatpush1.msra.mxu0 0.0
        %566 = vmatprep.subr.mxu0 0.0
        %567 = vmatpush1.msra.mxu0 0.0
        %568 = vmatprep.subr.mxu0 0.0
        %569 = vmatpush1.msra.mxu0 0.0
        %570 = vmatprep.subr.mxu0 0.0
        %571 = vmatpush1.msra.mxu0 0.0
        %572 = vmatprep.subr.mxu0 0.0
        %573 = vmatpush1.msra.mxu0 0.0
        %574 = vmatprep.subr.mxu0 0.0
        %575 = vmatpush1.msra.mxu0 0.0
        %576 = vmatprep.subr.mxu0 0.0
        %577 = vmatpush1.msra.mxu0 0.0
        %578 = vmatprep.subr.mxu0 0.0
        %579 = vmatpush1.msra.mxu0 0.0
        %580 = vmatprep.subr.mxu0 0.0
        %581 = vmatpush1.msra.mxu0 0.0
        %582 = vmatprep.subr.mxu0 0.0
        %583 = vmatpush1.msra.mxu0 0.0
        %584 = vmatprep.subr.mxu0 0.0
        %585 = vmatpush1.msra.mxu0 0.0
        %586 = vmatprep.subr.mxu0 0.0
        %587 = vmatpush1.msra.mxu0 0.0
        %588 = vmatprep.subr.mxu0 0.0
        %589 = vmatpush1.msra.mxu0 0.0
        %590 = vmatprep.subr.mxu0 0.0
        %591 = vmatpush1.msra.mxu0 0.0
        %592 = vmatprep.subr.mxu0 0.0
        %593 = vmatpush1.msra.mxu0 0.0
        %594 = vmatprep.subr.mxu0 0.0
        %595 = vmatpush1.msra.mxu0 0.0
        %596 = vmatprep.subr.mxu0 0.0
        %597 = vmatpush1.msra.mxu0 0.0
        %598 = vmatprep.subr.mxu0 0.0
        %599 = vmatpush1.msra.mxu0 0.0
        %600 = vmatprep.subr.mxu0 0.0
        %601 = vmatpush1.msra.mxu0 0.0
        %602 = vmatprep.subr.mxu0 0.0
        %603 = vmatpush1.msra.mxu0 0.0
        %604 = vmatprep.subr.mxu0 0.0
        %605 = vmatpush1.msra.mxu0 0.0
        %606 = vmatprep.subr.mxu0 0.0
        %607 = vmatpush1.msra.mxu0 0.0
        %608 = vmatprep.subr.mxu0 0.0
        %609 = vmatpush1.msra.mxu0 0.0
        %610 = vmatprep.subr.mxu0 0.0
        %611 = vmatpush1.msra.mxu0 0.0
        %612 = vmatprep.subr.mxu0 0.0
        %613 = vmatpush1.msra.mxu0 0.0
        %614 = vmatprep.subr.mxu0 0.0
        %615 = vmatpush1.msra.mxu0 0.0
        %616 = vmatprep.subr.mxu0 0.0
        %617 = vmatpush1.msra.mxu0 0.0
        %618 = vmatprep.subr.mxu0 0.0
        %619 = vmatpush1.msra.mxu0 0.0
        %620 = vmatprep.subr.mxu0 0.0
        %621 = vmatpush1.msra.mxu0 0.0
        %622 = vmatprep.subr.mxu0 0.0
        %623 = vmatpush1.msra.mxu0 0.0
        %624 = vmatprep.subr.mxu0 0.0
        %625 = vmatpush1.msra.mxu0 0.0
        %626 = vmatprep.mubr.f32.mxu0 0.0
        %627 = vmatmul.mubr.f32.gmra.mrb[0].mxu0 %v554
        %v628 = vpop.f32.mrb[0].mxu0
        %v629 = vadd.f32 0.0, %v628
        %v630 = vpop.f32.mrb[0].mxu0
        %v631 = vadd.f32 0.0, %v630
        %632 = vdwg.mxu0
        %v633 = vadd.f32 %v524, %v629
        %v634 = vadd.f32 %v525, %v631
        %s635 = scalar_lea.vmem %s199, 32
        %v636 = vld [vmem:[%s635] sm:$0xff]
        %v638 = vsel %vm255, %v636, 0
        %v640 = vsel %vm259, %v200, 0
        %v642 = vsel %vm259, %v202, 0
        %644 = vmatprep.subr.mxu0 %v642
        %645 = vmatpush1.msra.mxu0 %v640
        %646 = vmatprep.subr.mxu0 0.0
        %647 = vmatpush1.msra.mxu0 0.0
        %648 = vmatprep.subr.mxu0 0.0
        %649 = vmatpush1.msra.mxu0 0.0
        %650 = vmatprep.subr.mxu0 0.0
        %651 = vmatpush1.msra.mxu0 0.0
        %652 = vmatprep.subr.mxu0 0.0
        %653 = vmatpush1.msra.mxu0 0.0
        %654 = vmatprep.subr.mxu0 0.0
        %655 = vmatpush1.msra.mxu0 0.0
        %656 = vmatprep.subr.mxu0 0.0
        %657 = vmatpush1.msra.mxu0 0.0
        %658 = vmatprep.subr.mxu0 0.0
        %659 = vmatpush1.msra.mxu0 0.0
        %660 = vmatprep.subr.mxu0 0.0
        %661 = vmatpush1.msra.mxu0 0.0
        %662 = vmatprep.subr.mxu0 0.0
        %663 = vmatpush1.msra.mxu0 0.0
        %664 = vmatprep.subr.mxu0 0.0
        %665 = vmatpush1.msra.mxu0 0.0
        %666 = vmatprep.subr.mxu0 0.0
        %667 = vmatpush1.msra.mxu0 0.0
        %668 = vmatprep.subr.mxu0 0.0
        %669 = vmatpush1.msra.mxu0 0.0
        %670 = vmatprep.subr.mxu0 0.0
        %671 = vmatpush1.msra.mxu0 0.0
        %672 = vmatprep.subr.mxu0 0.0
        %673 = vmatpush1.msra.mxu0 0.0
        %674 = vmatprep.subr.mxu0 0.0
        %675 = vmatpush1.msra.mxu0 0.0
        %676 = vmatprep.subr.mxu0 0.0
        %677 = vmatpush1.msra.mxu0 0.0
        %678 = vmatprep.subr.mxu0 0.0
        %679 = vmatpush1.msra.mxu0 0.0
        %680 = vmatprep.subr.mxu0 0.0
        %681 = vmatpush1.msra.mxu0 0.0
        %682 = vmatprep.subr.mxu0 0.0
        %683 = vmatpush1.msra.mxu0 0.0
        %684 = vmatprep.subr.mxu0 0.0
        %685 = vmatpush1.msra.mxu0 0.0
        %686 = vmatprep.subr.mxu0 0.0
        %687 = vmatpush1.msra.mxu0 0.0
        %688 = vmatprep.subr.mxu0 0.0
        %689 = vmatpush1.msra.mxu0 0.0
        %690 = vmatprep.subr.mxu0 0.0
        %691 = vmatpush1.msra.mxu0 0.0
        %692 = vmatprep.subr.mxu0 0.0
        %693 = vmatpush1.msra.mxu0 0.0
        %694 = vmatprep.subr.mxu0 0.0
        %695 = vmatpush1.msra.mxu0 0.0
        %696 = vmatprep.subr.mxu0 0.0
        %697 = vmatpush1.msra.mxu0 0.0
        %698 = vmatprep.subr.mxu0 0.0
        %699 = vmatpush1.msra.mxu0 0.0
        %700 = vmatprep.subr.mxu0 0.0
        %701 = vmatpush1.msra.mxu0 0.0
        %702 = vmatprep.subr.mxu0 0.0
        %703 = vmatpush1.msra.mxu0 0.0
        %704 = vmatprep.subr.mxu0 0.0
        %705 = vmatpush1.msra.mxu0 0.0
        %706 = vmatprep.subr.mxu0 0.0
        %707 = vmatpush1.msra.mxu0 0.0
        %708 = vmatprep.mubr.f32.mxu0 0.0
        %709 = vmatmul.mubr.f32.gmra.mrb[0].mxu0 %v638
        %v710 = vpop.f32.mrb[0].mxu0
        %v711 = vadd.f32 0.0, %v710
        %v712 = vpop.f32.mrb[0].mxu0
        %v713 = vadd.f32 0.0, %v712
        %714 = vdwg.mxu0
        %v715 = vadd.f32 %v633, %v711
        %v716 = vadd.f32 %v634, %v713
        %717 = vrot.lane.b32.xlu0 %v200, 127
        %v718 = vpop.permute.xlu0 %717
        %719 = vrot.lane.b32.xlu0 %v202, 127
        %v720 = vpop.permute.xlu0 %719
        %vm721 = vcmask 1039360
        %v722 = vsel %vm721, %v718, %v720
        %v726 = vsel %vm721, %v720, %v718
        %s727 = scalar_lea.vmem %s2, 5
        %v728 = vld [vmem:[%s727] ss:$8 sm:$0x3]
        %v730 = vlaneseq
        %v731 = vshrl.u32 %v730, 7
        %v732 = vsub.s32 0, %v731
        %v733 = vrot.slane %v728, %v732
        %v734 = vlaneseq
        %v735 = vshrl.u32 %v734, 7
        %v736 = vsub.s32 1, %v735
        %v737 = vrot.slane %v728, %v736
        %v740 = vmul.f32 %v722, %v733
        %v741 = vmul.f32 %v726, %v737
        %s742 = scalar_lea.vmem %s199, 40
        %v743 = vld [vmem:[%s742] sm:$0xff]
        %v745 = vsel %vm255, %v743, 0
        %v748 = vsel %vm259, %v740, 0
        %v751 = vsel %vm259, %v741, 0
        %753 = vmatprep.subr.mxu0 %v751
        %754 = vmatpush1.msra.mxu0 %v748
        %755 = vmatprep.subr.mxu0 0.0
        %756 = vmatpush1.msra.mxu0 0.0
        %757 = vmatprep.subr.mxu0 0.0
        %758 = vmatpush1.msra.mxu0 0.0
        %759 = vmatprep.subr.mxu0 0.0
        %760 = vmatpush1.msra.mxu0 0.0
        %761 = vmatprep.subr.mxu0 0.0
        %762 = vmatpush1.msra.mxu0 0.0
        %763 = vmatprep.subr.mxu0 0.0
        %764 = vmatpush1.msra.mxu0 0.0
        %765 = vmatprep.subr.mxu0 0.0
        %766 = vmatpush1.msra.mxu0 0.0
        %767 = vmatprep.subr.mxu0 0.0
        %768 = vmatpush1.msra.mxu0 0.0
        %769 = vmatprep.subr.mxu0 0.0
        %770 = vmatpush1.msra.mxu0 0.0
        %771 = vmatprep.subr.mxu0 0.0
        %772 = vmatpush1.msra.mxu0 0.0
        %773 = vmatprep.subr.mxu0 0.0
        %774 = vmatpush1.msra.mxu0 0.0
        %775 = vmatprep.subr.mxu0 0.0
        %776 = vmatpush1.msra.mxu0 0.0
        %777 = vmatprep.subr.mxu0 0.0
        %778 = vmatpush1.msra.mxu0 0.0
        %779 = vmatprep.subr.mxu0 0.0
        %780 = vmatpush1.msra.mxu0 0.0
        %781 = vmatprep.subr.mxu0 0.0
        %782 = vmatpush1.msra.mxu0 0.0
        %783 = vmatprep.subr.mxu0 0.0
        %784 = vmatpush1.msra.mxu0 0.0
        %785 = vmatprep.subr.mxu0 0.0
        %786 = vmatpush1.msra.mxu0 0.0
        %787 = vmatprep.subr.mxu0 0.0
        %788 = vmatpush1.msra.mxu0 0.0
        %789 = vmatprep.subr.mxu0 0.0
        %790 = vmatpush1.msra.mxu0 0.0
        %791 = vmatprep.subr.mxu0 0.0
        %792 = vmatpush1.msra.mxu0 0.0
        %793 = vmatprep.subr.mxu0 0.0
        %794 = vmatpush1.msra.mxu0 0.0
        %795 = vmatprep.subr.mxu0 0.0
        %796 = vmatpush1.msra.mxu0 0.0
        %797 = vmatprep.subr.mxu0 0.0
        %798 = vmatpush1.msra.mxu0 0.0
        %799 = vmatprep.subr.mxu0 0.0
        %800 = vmatpush1.msra.mxu0 0.0
        %801 = vmatprep.subr.mxu0 0.0
        %802 = vmatpush1.msra.mxu0 0.0
        %803 = vmatprep.subr.mxu0 0.0
        %804 = vmatpush1.msra.mxu0 0.0
        %805 = vmatprep.subr.mxu0 0.0
        %806 = vmatpush1.msra.mxu0 0.0
        %807 = vmatprep.subr.mxu0 0.0
        %808 = vmatpush1.msra.mxu0 0.0
        %809 = vmatprep.subr.mxu0 0.0
        %810 = vmatpush1.msra.mxu0 0.0
        %811 = vmatprep.subr.mxu0 0.0
        %812 = vmatpush1.msra.mxu0 0.0
        %813 = vmatprep.subr.mxu0 0.0
        %814 = vmatpush1.msra.mxu0 0.0
        %815 = vmatprep.subr.mxu0 0.0
        %816 = vmatpush1.msra.mxu0 0.0
        %817 = vmatprep.mubr.f32.mxu0 0.0
        %818 = vmatmul.mubr.f32.gmra.mrb[0].mxu0 %v745
        %v819 = vpop.f32.mrb[0].mxu0
        %v820 = vadd.f32 0.0, %v819
        %v821 = vpop.f32.mrb[0].mxu0
        %v822 = vadd.f32 0.0, %v821
        %823 = vdwg.mxu0
        %v824 = vadd.f32 %v715, %v820
        %v825 = vadd.f32 %v716, %v822
        %826 = vrot.lane.b32.xlu0 %v200, 113
        %v827 = vpop.permute.xlu0 %826
        %828 = vrot.lane.b32.xlu0 %v202, 113
        %v829 = vpop.permute.xlu0 %828
        %vm830 = vcmask 924672
        %v831 = vsel %vm830, %v827, %v829
        %v835 = vsel %vm830, %v829, %v827
        %s836 = scalar_lea.vmem %s2, 6
        %v837 = vld [vmem:[%s836] ss:$8 sm:$0x3]
        %v839 = vlaneseq
        %v840 = vshrl.u32 %v839, 7
        %v841 = vsub.s32 0, %v840
        %v842 = vrot.slane %v837, %v841
        %v843 = vlaneseq
        %v844 = vshrl.u32 %v843, 7
        %v845 = vsub.s32 1, %v844
        %v846 = vrot.slane %v837, %v845
        %v849 = vmul.f32 %v831, %v842
        %v850 = vmul.f32 %v835, %v846
        %s851 = scalar_lea.vmem %s199, 48
        %v852 = vld [vmem:[%s851] sm:$0xff]
        %v854 = vsel %vm255, %v852, 0
        %v857 = vsel %vm259, %v849, 0
        %v860 = vsel %vm259, %v850, 0
        %862 = vmatprep.subr.mxu0 %v860
        %863 = vmatpush1.msra.mxu0 %v857
        %864 = vmatprep.subr.mxu0 0.0
        %865 = vmatpush1.msra.mxu0 0.0
        %866 = vmatprep.subr.mxu0 0.0
        %867 = vmatpush1.msra.mxu0 0.0
        %868 = vmatprep.subr.mxu0 0.0
        %869 = vmatpush1.msra.mxu0 0.0
        %870 = vmatprep.subr.mxu0 0.0
        %871 = vmatpush1.msra.mxu0 0.0
        %872 = vmatprep.subr.mxu0 0.0
        %873 = vmatpush1.msra.mxu0 0.0
        %874 = vmatprep.subr.mxu0 0.0
        %875 = vmatpush1.msra.mxu0 0.0
        %876 = vmatprep.subr.mxu0 0.0
        %877 = vmatpush1.msra.mxu0 0.0
        %878 = vmatprep.subr.mxu0 0.0
        %879 = vmatpush1.msra.mxu0 0.0
        %880 = vmatprep.subr.mxu0 0.0
        %881 = vmatpush1.msra.mxu0 0.0
        %882 = vmatprep.subr.mxu0 0.0
        %883 = vmatpush1.msra.mxu0 0.0
        %884 = vmatprep.subr.mxu0 0.0
        %885 = vmatpush1.msra.mxu0 0.0
        %886 = vmatprep.subr.mxu0 0.0
        %887 = vmatpush1.msra.mxu0 0.0
        %888 = vmatprep.subr.mxu0 0.0
        %889 = vmatpush1.msra.mxu0 0.0
        %890 = vmatprep.subr.mxu0 0.0
        %891 = vmatpush1.msra.mxu0 0.0
        %892 = vmatprep.subr.mxu0 0.0
        %893 = vmatpush1.msra.mxu0 0.0
        %894 = vmatprep.subr.mxu0 0.0
        %895 = vmatpush1.msra.mxu0 0.0
        %896 = vmatprep.subr.mxu0 0.0
        %897 = vmatpush1.msra.mxu0 0.0
        %898 = vmatprep.subr.mxu0 0.0
        %899 = vmatpush1.msra.mxu0 0.0
        %900 = vmatprep.subr.mxu0 0.0
        %901 = vmatpush1.msra.mxu0 0.0
        %902 = vmatprep.subr.mxu0 0.0
        %903 = vmatpush1.msra.mxu0 0.0
        %904 = vmatprep.subr.mxu0 0.0
        %905 = vmatpush1.msra.mxu0 0.0
        %906 = vmatprep.subr.mxu0 0.0
        %907 = vmatpush1.msra.mxu0 0.0
        %908 = vmatprep.subr.mxu0 0.0
        %909 = vmatpush1.msra.mxu0 0.0
        %910 = vmatprep.subr.mxu0 0.0
        %911 = vmatpush1.msra.mxu0 0.0
        %912 = vmatprep.subr.mxu0 0.0
        %913 = vmatpush1.msra.mxu0 0.0
        %914 = vmatprep.subr.mxu0 0.0
        %915 = vmatpush1.msra.mxu0 0.0
        %916 = vmatprep.subr.mxu0 0.0
        %917 = vmatpush1.msra.mxu0 0.0
        %918 = vmatprep.subr.mxu0 0.0
        %919 = vmatpush1.msra.mxu0 0.0
        %920 = vmatprep.subr.mxu0 0.0
        %921 = vmatpush1.msra.mxu0 0.0
        %922 = vmatprep.subr.mxu0 0.0
        %923 = vmatpush1.msra.mxu0 0.0
        %924 = vmatprep.subr.mxu0 0.0
        %925 = vmatpush1.msra.mxu0 0.0
        %926 = vmatprep.mubr.f32.mxu0 0.0
        %927 = vmatmul.mubr.f32.gmra.mrb[0].mxu0 %v854
        %v928 = vpop.f32.mrb[0].mxu0
        %v929 = vadd.f32 0.0, %v928
        %v930 = vpop.f32.mrb[0].mxu0
        %v931 = vadd.f32 0.0, %v930
        %932 = vdwg.mxu0
        %v933 = vadd.f32 %v824, %v929
        %v934 = vadd.f32 %v825, %v931
        %935 = vrot.lane.b32.xlu0 %v200, 112
        %v936 = vpop.permute.xlu0 %935
        %937 = vrot.lane.b32.xlu0 %v202, 112
        %v938 = vpop.permute.xlu0 %937
        %vm939 = vcmask 916480
        %v940 = vsel %vm939, %v936, %v938
        %v944 = vsel %vm939, %v938, %v936
        %s945 = scalar_lea.vmem %s2, 7
        %v946 = vld [vmem:[%s945] ss:$8 sm:$0x3]
        %v948 = vlaneseq
        %v949 = vshrl.u32 %v948, 7
        %v950 = vsub.s32 0, %v949
        %v951 = vrot.slane %v946, %v950
        %v952 = vlaneseq
        %v953 = vshrl.u32 %v952, 7
        %v954 = vsub.s32 1, %v953
        %v955 = vrot.slane %v946, %v954
        %v958 = vmul.f32 %v940, %v951
        %v959 = vmul.f32 %v944, %v955
        %s960 = scalar_lea.vmem %s199, 56
        %v961 = vld [vmem:[%s960] sm:$0xff]
        %v963 = vsel %vm255, %v961, 0
        %v966 = vsel %vm259, %v958, 0
        %v969 = vsel %vm259, %v959, 0
        %971 = vmatprep.subr.mxu0 %v969
        %972 = vmatpush1.msra.mxu0 %v966
        %973 = vmatprep.subr.mxu0 0.0
        %974 = vmatpush1.msra.mxu0 0.0
        %975 = vmatprep.subr.mxu0 0.0
        %976 = vmatpush1.msra.mxu0 0.0
        %977 = vmatprep.subr.mxu0 0.0
        %978 = vmatpush1.msra.mxu0 0.0
        %979 = vmatprep.subr.mxu0 0.0
        %980 = vmatpush1.msra.mxu0 0.0
        %981 = vmatprep.subr.mxu0 0.0
        %982 = vmatpush1.msra.mxu0 0.0
        %983 = vmatprep.subr.mxu0 0.0
        %984 = vmatpush1.msra.mxu0 0.0
        %985 = vmatprep.subr.mxu0 0.0
        %986 = vmatpush1.msra.mxu0 0.0
        %987 = vmatprep.subr.mxu0 0.0
        %988 = vmatpush1.msra.mxu0 0.0
        %989 = vmatprep.subr.mxu0 0.0
        %990 = vmatpush1.msra.mxu0 0.0
        %991 = vmatprep.subr.mxu0 0.0
        %992 = vmatpush1.msra.mxu0 0.0
        %993 = vmatprep.subr.mxu0 0.0
        %994 = vmatpush1.msra.mxu0 0.0
        %995 = vmatprep.subr.mxu0 0.0
        %996 = vmatpush1.msra.mxu0 0.0
        %997 = vmatprep.subr.mxu0 0.0
        %998 = vmatpush1.msra.mxu0 0.0
        %999 = vmatprep.subr.mxu0 0.0
        %1000 = vmatpush1.msra.mxu0 0.0
        %1001 = vmatprep.subr.mxu0 0.0
        %1002 = vmatpush1.msra.mxu0 0.0
        %1003 = vmatprep.subr.mxu0 0.0
        %1004 = vmatpush1.msra.mxu0 0.0
        %1005 = vmatprep.subr.mxu0 0.0
        %1006 = vmatpush1.msra.mxu0 0.0
        %1007 = vmatprep.subr.mxu0 0.0
        %1008 = vmatpush1.msra.mxu0 0.0
        %1009 = vmatprep.subr.mxu0 0.0
        %1010 = vmatpush1.msra.mxu0 0.0
        %1011 = vmatprep.subr.mxu0 0.0
        %1012 = vmatpush1.msra.mxu0 0.0
        %1013 = vmatprep.subr.mxu0 0.0
        %1014 = vmatpush1.msra.mxu0 0.0
        %1015 = vmatprep.subr.mxu0 0.0
        %1016 = vmatpush1.msra.mxu0 0.0
        %1017 = vmatprep.subr.mxu0 0.0
        %1018 = vmatpush1.msra.mxu0 0.0
        %1019 = vmatprep.subr.mxu0 0.0
        %1020 = vmatpush1.msra.mxu0 0.0
        %1021 = vmatprep.subr.mxu0 0.0
        %1022 = vmatpush1.msra.mxu0 0.0
        %1023 = vmatprep.subr.mxu0 0.0
        %1024 = vmatpush1.msra.mxu0 0.0
        %1025 = vmatprep.subr.mxu0 0.0
        %1026 = vmatpush1.msra.mxu0 0.0
        %1027 = vmatprep.subr.mxu0 0.0
        %1028 = vmatpush1.msra.mxu0 0.0
        %1029 = vmatprep.subr.mxu0 0.0
        %1030 = vmatpush1.msra.mxu0 0.0
        %1031 = vmatprep.subr.mxu0 0.0
        %1032 = vmatpush1.msra.mxu0 0.0
        %1033 = vmatprep.subr.mxu0 0.0
        %1034 = vmatpush1.msra.mxu0 0.0
        %1035 = vmatprep.mubr.f32.mxu0 0.0
        %1036 = vmatmul.mubr.f32.gmra.mrb[0].mxu0 %v963
        %v1037 = vpop.f32.mrb[0].mxu0
        %v1038 = vadd.f32 0.0, %v1037
        %v1039 = vpop.f32.mrb[0].mxu0
        %v1040 = vadd.f32 0.0, %v1039
        %1041 = vdwg.mxu0
        %v1042 = vadd.f32 %v933, %v1038
        %v1043 = vadd.f32 %v934, %v1040
        %1044 = vrot.lane.b32.xlu0 %v200, 111
        %v1045 = vpop.permute.xlu0 %1044
        %1046 = vrot.lane.b32.xlu0 %v202, 111
        %v1047 = vpop.permute.xlu0 %1046
        %vm1048 = vcmask 908288
        %v1049 = vsel %vm1048, %v1045, %v1047
        %v1053 = vsel %vm1048, %v1047, %v1045
        %s1054 = scalar_lea.vmem %s2, 16
        %v1055 = vld [vmem:[%s1054] ss:$8 sm:$0x3]
        %v1057 = vlaneseq
        %v1058 = vshrl.u32 %v1057, 7
        %v1059 = vsub.s32 0, %v1058
        %v1060 = vrot.slane %v1055, %v1059
        %v1061 = vlaneseq
        %v1062 = vshrl.u32 %v1061, 7
        %v1063 = vsub.s32 1, %v1062
        %v1064 = vrot.slane %v1055, %v1063
        %v1067 = vmul.f32 %v1049, %v1060
        %v1068 = vmul.f32 %v1053, %v1064
        %s1069 = scalar_lea.vmem %s199, 64
        %v1070 = vld [vmem:[%s1069] sm:$0xff]
        %v1072 = vsel %vm255, %v1070, 0
        %v1075 = vsel %vm259, %v1067, 0
        %v1078 = vsel %vm259, %v1068, 0
        %1080 = vmatprep.subr.mxu0 %v1078
        %1081 = vmatpush1.msra.mxu0 %v1075
        %1082 = vmatprep.subr.mxu0 0.0
        %1083 = vmatpush1.msra.mxu0 0.0
        %1084 = vmatprep.subr.mxu0 0.0
        %1085 = vmatpush1.msra.mxu0 0.0
        %1086 = vmatprep.subr.mxu0 0.0
        %1087 = vmatpush1.msra.mxu0 0.0
        %1088 = vmatprep.subr.mxu0 0.0
        %1089 = vmatpush1.msra.mxu0 0.0
        %1090 = vmatprep.subr.mxu0 0.0
        %1091 = vmatpush1.msra.mxu0 0.0
        %1092 = vmatprep.subr.mxu0 0.0
        %1093 = vmatpush1.msra.mxu0 0.0
        %1094 = vmatprep.subr.mxu0 0.0
        %1095 = vmatpush1.msra.mxu0 0.0
        %1096 = vmatprep.subr.mxu0 0.0
        %1097 = vmatpush1.msra.mxu0 0.0
        %1098 = vmatprep.subr.mxu0 0.0
        %1099 = vmatpush1.msra.mxu0 0.0
        %1100 = vmatprep.subr.mxu0 0.0
        %1101 = vmatpush1.msra.mxu0 0.0
        %1102 = vmatprep.subr.mxu0 0.0
        %1103 = vmatpush1.msra.mxu0 0.0
        %1104 = vmatprep.subr.mxu0 0.0
        %1105 = vmatpush1.msra.mxu0 0.0
        %1106 = vmatprep.subr.mxu0 0.0
        %1107 = vmatpush1.msra.mxu0 0.0
        %1108 = vmatprep.subr.mxu0 0.0
        %1109 = vmatpush1.msra.mxu0 0.0
        %1110 = vmatprep.subr.mxu0 0.0
        %1111 = vmatpush1.msra.mxu0 0.0
        %1112 = vmatprep.subr.mxu0 0.0
        %1113 = vmatpush1.msra.mxu0 0.0
        %1114 = vmatprep.subr.mxu0 0.0
        %1115 = vmatpush1.msra.mxu0 0.0
        %1116 = vmatprep.subr.mxu0 0.0
        %1117 = vmatpush1.msra.mxu0 0.0
        %1118 = vmatprep.subr.mxu0 0.0
        %1119 = vmatpush1.msra.mxu0 0.0
        %1120 = vmatprep.subr.mxu0 0.0
        %1121 = vmatpush1.msra.mxu0 0.0
        %1122 = vmatprep.subr.mxu0 0.0
        %1123 = vmatpush1.msra.mxu0 0.0
        %1124 = vmatprep.subr.mxu0 0.0
        %1125 = vmatpush1.msra.mxu0 0.0
        %1126 = vmatprep.subr.mxu0 0.0
        %1127 = vmatpush1.msra.mxu0 0.0
        %1128 = vmatprep.subr.mxu0 0.0
        %1129 = vmatpush1.msra.mxu0 0.0
        %1130 = vmatprep.subr.mxu0 0.0
        %1131 = vmatpush1.msra.mxu0 0.0
        %1132 = vmatprep.subr.mxu0 0.0
        %1133 = vmatpush1.msra.mxu0 0.0
        %1134 = vmatprep.subr.mxu0 0.0
        %1135 = vmatpush1.msra.mxu0 0.0
        %1136 = vmatprep.subr.mxu0 0.0
        %1137 = vmatpush1.msra.mxu0 0.0
        %1138 = vmatprep.subr.mxu0 0.0
        %1139 = vmatpush1.msra.mxu0 0.0
        %1140 = vmatprep.subr.mxu0 0.0
        %1141 = vmatpush1.msra.mxu0 0.0
        %1142 = vmatprep.subr.mxu0 0.0
        %1143 = vmatpush1.msra.mxu0 0.0
        %1144 = vmatprep.mubr.f32.mxu0 0.0
        %1145 = vmatmul.mubr.f32.gmra.mrb[0].mxu0 %v1072
        %v1146 = vpop.f32.mrb[0].mxu0
        %v1147 = vadd.f32 0.0, %v1146
        %v1148 = vpop.f32.mrb[0].mxu0
        %v1149 = vadd.f32 0.0, %v1148
        %1150 = vdwg.mxu0
        %v1151 = vadd.f32 %v1042, %v1147
        %v1152 = vadd.f32 %v1043, %v1149
        %1153 = vst [vmem:[%s190] sm:$0xff] %v1151
        %1154 = vst [vmem:[%s190 + $0x8] sm:$0xff] %v1152
        %s1155 = sand.u32 %s112, 1
        %s1156 = scalar_lea.sflag [#allocation3], %s1155
        %s1157 = sand.u32 %s112, 1
        %s1158 = smul.addr %s1157, 16
        %s1159 = scalar_lea.vmem [#allocation2], %s1158
        // Predicated region
        $region33: #{tpu_custom_call.1} parent=31 // pred_check
          %p1160 = pneg %p122
        $region34: #{tpu_custom_call.1} parent=31 // pred_check_branch
          %1162 = sbr.rel (%p1160) target = $region36
        $region35: #{tpu_custom_call.1} parent=31 // pred_region
          %s1164 = ssub.s32 256, 256
          %1165 = vsyncadd %s1156, %s1164
          %s1166 = smul.addr %s22, 2
          %s1167 = smul.addr %s21, 2
          %s1168 = sadd.s32 %s1166, %s1167
          %s1169 = smul.addr %s1168, 128
          %s1170 = scalar_lea.hbm %s3, %s1169
          %s1172 = sshll.u32 %s1159, 4
          %s1173 = int_to_ptr.vmem [resolvable:$true] %s1172
          %1175 = dma.vmem_to_hbm [thread:$0]  %s1173, 256, %s1170, %s1156
        $region36: #{tpu_custom_call.1} parent=31 // pred_fallthru
          _
      $region32: #{tpu_custom_call.1} parent=5 // pred_fallthru
        _
      %p1176 = scmp.le.s32.totalorder 2, %s12
      // Predicated region
      $region37: #{tpu_custom_call.1} parent=5 // pred_check
        %p1177 = pneg %p1176
      $region38: #{tpu_custom_call.1} parent=5 // pred_check_branch
        %1179 = sbr.rel (%p1177) target = $region40
      $region39: #{tpu_custom_call.1} parent=5 // pred_region
        %s1180 = ssub.s32 %s12, 2
        // Predicated region
        $region41: #{tpu_custom_call.1} parent=39 // pred_check
          %p1181 = pneg %p128
        $region42: #{tpu_custom_call.1} parent=39 // pred_check_branch
          %1183 = sbr.rel (%p1181) target = $region44
        $region43: #{tpu_custom_call.1} parent=39 // pred_region
          %s1184 = sand.u32 %s113, 1
          %s1185 = scalar_lea.sflag [#allocation3], %s1184
          %s1186 = sand.u32 %s113, 1
          %s1187 = smul.addr %s1186, 16
          %s1188 = scalar_lea.vmem [#allocation2], %s1187
          %1189 = dma.done %s1185, 256
        $region44: #{tpu_custom_call.1} parent=39 // pred_fallthru
          _
      $region40: #{tpu_custom_call.1} parent=5 // pred_fallthru
        _
    $region6: #{tpu_custom_call.1} parent=1 // loop_footer
      %s16 = sadd.s32 1, %s12
    $region7: #{tpu_custom_call.1} parent=1 // loop_footer_branch
      %11 = sbr.rel target = $region3
    $region8: #{tpu_custom_call.1} parent=1 // loop_exit
      _
    %1190 = vsyncpa [#allocation3], 1
    %s1191 = scalar_lea.sflag [#allocation3], 1
    %1192 = vsyncpa %s1191, 1

</llo_original>
